<compile_context>
chip_gen: v7x
topology: tpu7x:2x2x1
jax: 0.10.0
libtpu: 0.0.40
codegen_flags: <defaults>
</compile_context>

<pallas_src>
import functools

import jax
import jax.numpy as jnp
from jax.experimental import pallas as pl
from jax.experimental.pallas import tpu as pltpu

_LANES = 128
_CHUNK_ROWS = 512                      # 512 x 128 x 4B = 256 KiB f32 per in-kernel chunk
_ACC_ROWS = 32                         # (32,128) f32 accumulator scratch
_TARGET_BLOCK_BYTES = 4 * 1024 * 1024  # ~4 MiB of HBM traffic per input per grid step
_VMEM_LIMIT_BYTES = 48 * 1024 * 1024   # 16 MiB double-buffered inputs + temps; < v7x 64 MiB


def _tensorcores_per_chip():
    """2 on megacore-style chips (v7x / v4 / v5p), else 1 (v5e / v6e)."""
    try:
        kind = jax.devices()[0].device_kind.lower()
    except Exception:
        return 1
    if "v7" in kind or "v4" in kind or "v5p" in kind:
        return 2
    return 1


def _l12_kernel(x_ref, y_ref, o_ref, acc_ref, *,
                inv_n, block_rows, chunk_rows, valid_rows,
                blocks_per_core, needs_mask):
    c = pl.program_id(0)          # core / stream-shard index   ("parallel")
    i = pl.program_id(1)          # reduction step in the shard ("arbitrary")

    @pl.when(i == 0)
    def _():
        acc_ref[...] = jnp.zeros_like(acc_ref)

    acc_rows = acc_ref.shape[0]
    n_chunks = block_rows // chunk_rows
    # Logical (global) first row of this block; used only for boundary masking.
    block_base = (c * blocks_per_core + i) * block_rows

    def accumulate(start, masked):
        xd = x_ref[pl.ds(start, chunk_rows), :].astype(jnp.float32)
        yd = y_ref[pl.ds(start, chunk_rows), :].astype(jnp.float32)
        d = xd - yd
        v = jnp.abs(d) + d * d          # sum(v)/n == mean|d| + mean(d^2)
        if masked:
            row_ids = (block_base + start) + jax.lax.broadcasted_iota(
                jnp.int32, v.shape, 0)
            v = jnp.where(row_ids < valid_rows, v, jnp.float32(0.0))
        # VPU add-tree into a vreg-resident (acc_rows,128) accumulator; no
        # per-chunk cross-lane reduce, no per-chunk scalar round trip.
        acc_ref[...] += jnp.sum(v.reshape(-1, acc_rows, _LANES), axis=0)

    def run(masked):
        if n_chunks == 1:
            accumulate(0, masked)
        else:
            @pl.loop(0, n_chunks)
            def _(it):
                accumulate(pl.multiple_of(it * chunk_rows, chunk_rows), masked)

    if needs_mask:
        # Only boundary / overhang blocks pay for the iota+compare+select mask.
        is_full = (block_base + block_rows) <= valid_rows

        @pl.when(is_full)
        def _():
            run(masked=False)

        @pl.when(jnp.logical_not(is_full))
        def _():
            run(masked=True)
    else:
        run(masked=False)

    @pl.when(i == pl.num_programs(1) - 1)
    def _():
        # Single cross-lane / cross-sublane reduce + 1/n scale in the epilogue.
        o_ref[0, 0] = jnp.sum(acc_ref[...]) * jnp.float32(inv_n)


def l12_loss(x, y, *, block_rows=None, chunk_rows=None, num_cores=None):
    assert x.shape == y.shape, "input and target must have the same shape"
    n = x.size
    assert n > 0, "empty input"
    inv_n = 1.0 / float(n)

    xf = x.reshape(-1)
    yf = y.reshape(-1)

    rows = n // _LANES
    rem = n - rows * _LANES
    tail_sum = None

    if rows == 0:
        # Tiny (<128-element) input: pad to a single (8,128) block (negligible).
        pad = 8 * _LANES - n
        xf = jnp.pad(xf, (0, pad))
        yf = jnp.pad(yf, (0, pad))
        rows, rem = 8, 0
    elif rem:
        # Ragged lane tail (<128 elements): tiny out-of-band XLA reduce instead
        # of materializing full padded copies of both inputs.
        dt = xf[n - rem:].astype(jnp.float32) - yf[n - rem:].astype(jnp.float32)
        tail_sum = jnp.sum(jnp.abs(dt) + dt * dt)
        xf = xf[: n - rem]
        yf = yf[: n - rem]

    if chunk_rows is None:
        chunk_rows = _CHUNK_ROWS

    if rows <= chunk_rows:
        # Small input: one block == whole array, one chunk, one core, no mask.
        acc_rows = 8
        if rows % acc_rows:
            pad_r = (acc_rows - rows % acc_rows) * _LANES
            xf = jnp.pad(xf, (0, pad_r))
            yf = jnp.pad(yf, (0, pad_r))
            rows = xf.size // _LANES
        block_rows = rows
        chunk_rows = rows
        num_cores = 1
        blocks_per_core = 1
        needs_mask = False
        in_map = lambda c, i: (0, 0)
    else:
        acc_rows = _ACC_ROWS
        assert chunk_rows % acc_rows == 0, "chunk_rows must be a multiple of 32"
        itemsize = jnp.dtype(x.dtype).itemsize
        if block_rows is None:
            # dtype-aware block size: keep ~_TARGET_BLOCK_BYTES of HBM traffic
            # per input block regardless of element width.
            block_rows = max(
                chunk_rows,
                (_TARGET_BLOCK_BYTES // (_LANES * itemsize))
                // chunk_rows * chunk_rows)
        assert block_rows % chunk_rows == 0, "block_rows must be a multiple of chunk_rows"
        # Never make the block (much) larger than the data itself.
        block_rows = min(block_rows, pl.cdiv(rows, chunk_rows) * chunk_rows)

        num_blocks = pl.cdiv(rows, block_rows)
        if num_cores is None:
            num_cores = _tensorcores_per_chip()
        num_cores = max(1, min(num_cores, num_blocks))
        blocks_per_core = pl.cdiv(num_blocks, num_cores)
        # Mask needed iff logical coverage (cores * steps * block_rows) overshoots.
        needs_mask = (num_cores * blocks_per_core * block_rows) != rows

        if num_cores * blocks_per_core == num_blocks:
            in_map = lambda c, i: (c * blocks_per_core + i, 0)
        else:
            # Clamp the physical block index so no DMA starts fully out of
            # bounds; the in-kernel logical-row mask zeroes the re-read data.
            last_blk = num_blocks - 1
            in_map = lambda c, i: (jnp.minimum(c * blocks_per_core + i, last_blk), 0)

    x2 = xf.reshape(rows, _LANES)
    y2 = yf.reshape(rows, _LANES)

    kernel = functools.partial(
        _l12_kernel,
        inv_n=inv_n,
        block_rows=block_rows,
        chunk_rows=chunk_rows,
        valid_rows=rows,
        blocks_per_core=blocks_per_core,
        needs_mask=needs_mask,
    )

    partials = pl.pallas_call(
        kernel,
        out_shape=jax.ShapeDtypeStruct((num_cores, 1), jnp.float32),
        grid_spec=pltpu.PrefetchScalarGridSpec(
            num_scalar_prefetch=0,
            grid=(num_cores, blocks_per_core),
            in_specs=[
                pl.BlockSpec((block_rows, _LANES), in_map),
                pl.BlockSpec((block_rows, _LANES), in_map),
            ],
            out_specs=pl.BlockSpec(
                (1, 1), lambda c, i: (c, 0), memory_space=pltpu.SMEM),
            scratch_shapes=[pltpu.VMEM((acc_rows, _LANES), jnp.float32)],
        ),
        compiler_params=pltpu.CompilerParams(
            dimension_semantics=("parallel", "arbitrary"),
            vmem_limit_bytes=_VMEM_LIMIT_BYTES,
        ),
    )(x2, y2)

    out = jnp.sum(partials)   # per-core partials, each already scaled by 1/n
    if tail_sum is not None:
        out = out + tail_sum * jnp.float32(inv_n)
    return out


def l12_loss_ref(x, y):
    d = x.astype(jnp.float32) - y.astype(jnp.float32)
    return jnp.mean(jnp.abs(d)) + jnp.mean(d * d)


if __name__ == "__main__":
    key = jax.random.PRNGKey(0)
    k1, k2, k3, k4, k5, k6 = jax.random.split(key, 6)

    # Small NCHW inputs, as in the PyTorch module's typical usage.
    x = jax.random.normal(k1, (2, 4, 16, 16), dtype=jnp.float32)
    y = jax.random.normal(k2, (2, 4, 16, 16), dtype=jnp.float32)
    out = jax.block_until_ready(l12_loss(x, y))
    ref = jax.block_until_ready(l12_loss_ref(x, y))
    assert jnp.allclose(out, ref, rtol=1e-5, atol=1e-6), (out, ref)

    # Ragged shape + tiny overridden tiles: exercises the lane-tail path, the
    # multi-block streaming path, boundary masking and (on 2-TC chips) both cores.
    xb = jax.random.normal(k3, (3, 5, 31, 127), dtype=jnp.float32)
    yb = jax.random.normal(k4, (3, 5, 31, 127), dtype=jnp.float32)
    out_b = jax.block_until_ready(l12_loss(xb, yb, block_rows=128, chunk_rows=64))
    ref_b = jax.block_until_ready(l12_loss_ref(xb, yb))
    assert jnp.allclose(out_b, ref_b, rtol=1e-5, atol=1e-5), (out_b, ref_b)

    # Larger f32 case on default (dtype-aware) tiles: multi-block streaming path.
    xc = jax.random.normal(k5, (4, 8, 128, 1024), dtype=jnp.float32)
    yc = jax.random.normal(k6, (4, 8, 128, 1024), dtype=jnp.float32)
    out_c = jax.block_until_ready(l12_loss(xc, yc))
    ref_c = jax.block_until_ready(l12_loss_ref(xc, yc))
    assert jnp.allclose(out_c, ref_c, rtol=1e-4, atol=1e-5), (out_c, ref_c)

    # bf16 inputs: dtype-aware block sizing + in-kernel f32 upcast.
    xd = jax.random.normal(k1, (8, 256, 512), dtype=jnp.bfloat16)
    yd = jax.random.normal(k2, (8, 256, 512), dtype=jnp.bfloat16)
    out_d = jax.block_until_ready(l12_loss(xd, yd))
    ref_d = jax.block_until_ready(l12_loss_ref(xd, yd))
    assert jnp.allclose(out_d, ref_d, rtol=1e-4, atol=1e-4), (out_d, ref_d)

    print("KERNEL_OK")
</pallas_src>

<mosaic_0001>
module attributes {stable_mosaic.version = 11 : i64} {
  func.func @_l12_kernel(%arg0: i32, %arg1: i32, %arg2: memref<16x128xf32, #tpu.memory_space<vmem>>, %arg3: memref<16x128xf32, #tpu.memory_space<vmem>>, %arg4: memref<1x1xf32, #tpu.memory_space<smem>>, %arg5: memref<8x128xf32, #tpu.memory_space<vmem>>) attributes {dimension_semantics = [#tpu.dimension_semantics<parallel>, #tpu.dimension_semantics<arbitrary>], iteration_bounds = array<i64: 1, 1>, scalar_prefetch = 0 : i64, scratch_operands = 1 : i64, tpu.core_type = #tpu.core_type<tc>, window_params = [{pipeline_mode = #tpu.pipeline_mode<synchronous>, transform_indices = @transform_0, window_bounds = array<i64: 16, 128>}, {pipeline_mode = #tpu.pipeline_mode<synchronous>, transform_indices = @transform_1, window_bounds = array<i64: 16, 128>}, {transform_indices = @transform_2, window_bounds = array<i64: 1, 1>}]} {
    %c0_i32 = arith.constant 0 : i32
    %0 = arith.cmpi eq, %arg1, %c0_i32 : i32
    %1 = arith.extui %0 : i1 to i32
    %c0_i32_0 = arith.constant 0 : i32
    %2 = arith.cmpi ne, %1, %c0_i32_0 : i32
    scf.if %2 {
      %cst_10 = arith.constant 0.000000e+00 : f32
      %17 = vector.broadcast %cst_10 : f32 to vector<8x128xf32>
      %c0_11 = arith.constant 0 : index
      %c0_12 = arith.constant 0 : index
      %18 = vector.load %arg5[%c0_11, %c0_12] : memref<8x128xf32, #tpu.memory_space<vmem>>, vector<8x128xf32>
      tpu.vector_store %arg5[%c0_11, %c0_12], %17 {strides = array<i32>} : memref<8x128xf32, #tpu.memory_space<vmem>>, vector<8x128xf32>,
    } else {
    }
    %c0 = arith.constant 0 : index
    %c0_1 = arith.constant 0 : index
    %3 = vector.load %arg2[%c0, %c0_1] : memref<16x128xf32, #tpu.memory_space<vmem>>, vector<16x128xf32>
    %c0_2 = arith.constant 0 : index
    %c0_3 = arith.constant 0 : index
    %4 = vector.load %arg3[%c0_2, %c0_3] : memref<16x128xf32, #tpu.memory_space<vmem>>, vector<16x128xf32>
    %5 = arith.subf %3, %4 : vector<16x128xf32>
    %6 = math.absf %5 : vector<16x128xf32>
    %7 = arith.mulf %5, %5 : vector<16x128xf32>
    %8 = arith.addf %6, %7 : vector<16x128xf32>
    %c0_4 = arith.constant 0 : index
    %c0_5 = arith.constant 0 : index
    %9 = vector.load %arg5[%c0_4, %c0_5] : memref<8x128xf32, #tpu.memory_space<vmem>>, vector<8x128xf32>
    %10 = vector.shape_cast %8 : vector<16x128xf32> to vector<2x8x128xf32>
    %cst = arith.constant dense<0.000000e+00> : vector<8x128xf32>
    %11 = vector.multi_reduction <add>, %10, %cst [0] : vector<2x8x128xf32> to vector<8x128xf32>
    %12 = arith.addf %9, %11 : vector<8x128xf32>
    %c0_6 = arith.constant 0 : index
    %c0_7 = arith.constant 0 : index
    %13 = vector.load %arg5[%c0_6, %c0_7] : memref<8x128xf32, #tpu.memory_space<vmem>>, vector<8x128xf32>
    tpu.vector_store %arg5[%c0_6, %c0_7], %12 {strides = array<i32>} : memref<8x128xf32, #tpu.memory_space<vmem>>, vector<8x128xf32>,
    %c0_i32_8 = arith.constant 0 : i32
    %14 = arith.cmpi eq, %arg1, %c0_i32_8 : i32
    %15 = arith.extui %14 : i1 to i32
    %c0_i32_9 = arith.constant 0 : i32
    %16 = arith.cmpi ne, %15, %c0_i32_9 : i32
    scf.if %16 {
      %c0_10 = arith.constant 0 : index
      %c0_11 = arith.constant 0 : index
      %17 = vector.load %arg5[%c0_10, %c0_11] : memref<8x128xf32, #tpu.memory_space<vmem>>, vector<8x128xf32>
      %18 = vector.shape_cast %17 : vector<8x128xf32> to vector<1x8x128xf32>
      %cst_12 = arith.constant dense<0.000000e+00> : vector<1xf32>
      %19 = vector.multi_reduction <add>, %18, %cst_12 [1, 2] : vector<1x8x128xf32> to vector<1xf32>
      %20 = vector.shape_cast %19 : vector<1xf32> to vector<1x1x1xf32>
      %21 = vector.extract %20[0, 0, 0] : f32 from vector<1x1x1xf32>
      %cst_13 = arith.constant 4.8828125E-4 : f32
      %22 = arith.mulf %21, %cst_13 : f32
      %c0_14 = arith.constant 0 : index
      %c0_15 = arith.constant 0 : index
      %23 = memref.load %arg4[%c0_14, %c0_15] : memref<1x1xf32, #tpu.memory_space<smem>>
      memref.store %22, %arg4[%c0_14, %c0_15] : memref<1x1xf32, #tpu.memory_space<smem>>
    } else {
    }
    return
  }
  func.func @transform_0(%arg0: i32, %arg1: i32) -> (i32, i32) {
    %c0_i32 = arith.constant 0 : i32
    %c0_i32_0 = arith.constant 0 : i32
    %c0_i32_1 = arith.constant 0 : i32
    return %c0_i32, %c0_i32_0 : i32, i32
  }
  func.func @transform_1(%arg0: i32, %arg1: i32) -> (i32, i32) {
    %c0_i32 = arith.constant 0 : i32
    %c0_i32_0 = arith.constant 0 : i32
    %c0_i32_1 = arith.constant 0 : i32
    return %c0_i32, %c0_i32_0 : i32, i32
  }
  func.func @transform_2(%arg0: i32, %arg1: i32) -> (i32, i32) {
    %c0_i32 = arith.constant 0 : i32
    %c0_i32_0 = arith.constant 0 : i32
    return %arg0, %c0_i32 : i32, i32
  }
}

</mosaic_0001>

<llo_original>
// kernel: tpu_custom_call.1
$region0: #{tpu_custom_call.1}
  #allocation0 [shape = 'u32[]', space=smem, size = 0x4, offset = 0x4, fixed_abs, tag = 'smem constant byte address 0x4 - core index']
  #allocation1 [shape = 'u32[144,128]{1,0:T(1,128)}', space=vmem, size = 0x12000, scoped, tag = 'internal scratch']
  #allocation2 [shape = 'f32[8,128]{1,0:T(8,128)}', space=vmem, size = 0x1000, scoped, tag = 'scratch operand']
  %s0 = inlined_call_operand.hbm [shape: f32[16,128], index: 0, kind: input, shape index: {}]
  %s1 = inlined_call_operand.hbm [shape: f32[16,128], index: 1, kind: input, shape index: {}]
  %s2 = inlined_call_operand.hbm [shape: f32[1,1], index: 2, kind: output, shape index: {}]
  %s3 = sld [smem:[#allocation0]]
  $region34: #{tpu_custom_call.1} parent=0
    _
  %s5 = ssub.s32 1, %s3
  %s6 = scalar_select 0, %s5, %s3
  $region1: #{tpu_custom_call.1} parent=0
    #allocation3 [shape = 'u8[8192]{0}', space=vmem, size = 0x2000, scoped, tag = 'input window, operand 0, single buffered']
    #allocation4 [shape = 's32[1]{0}', space=sflag, size = 0x4, scoped, tag = 'scoped memory for tpu_custom_call.1']
    #allocation5 [shape = 's32[1]{0}', space=sflag, size = 0x4, scoped, tag = 'scoped memory for tpu_custom_call.1']
    #allocation6 [shape = 'u8[8192]{0}', space=vmem, size = 0x2000, scoped, tag = 'input window, operand 1, single buffered']
    #allocation7 [shape = 's32[1]{0}', space=sflag, size = 0x4, scoped, tag = 'scoped memory for tpu_custom_call.1']
    #allocation8 [shape = 'u8[512]{0}', space=smem, size = 0x200, scoped, tag = 'output window, operand 0, single buffered']
    %7 = vsyncpa [#allocation4], 0
    %8 = vsyncpa [#allocation7], 0
    %9 = vsyncpa [#allocation5], 0
    // Predicated region
    $region2: #{tpu_custom_call.1} parent=1 // pred_check
      _
    $region3: #{tpu_custom_call.1} parent=1 // pred_check_branch
      %11 = sbr.rel (0) target = $region5
    $region4: #{tpu_custom_call.1} parent=1 // pred_region
      %s13 = ssub.s32 256, 256
      %14 = vsyncadd [#allocation4], %s13
      %s15 = sshll.u32 [#allocation3], 4
      %s16 = int_to_ptr.vmem [resolvable:$true] %s15
      %21 = dma.hbm_to_vmem [thread:$0]  %s0, 256, %s16, [#allocation4], 128, 128, 8
    $region5: #{tpu_custom_call.1} parent=1 // pred_fallthru
      _
    // Predicated region
    $region6: #{tpu_custom_call.1} parent=1 // pred_check
      _
    $region7: #{tpu_custom_call.1} parent=1 // pred_check_branch
      %23 = sbr.rel (0) target = $region9
    $region8: #{tpu_custom_call.1} parent=1 // pred_region
      %s25 = ssub.s32 256, 256
      %26 = vsyncadd [#allocation7], %s25
      %s27 = sshll.u32 [#allocation6], 4
      %s28 = int_to_ptr.vmem [resolvable:$true] %s27
      %33 = dma.hbm_to_vmem [thread:$0]  %s1, 256, %s28, [#allocation7], 128, 128, 8
    $region9: #{tpu_custom_call.1} parent=1 // pred_fallthru
      _
    // Predicated region
    $region10: #{tpu_custom_call.1} parent=1 // pred_check
      _
    $region11: #{tpu_custom_call.1} parent=1 // pred_check_branch
      %35 = sbr.rel (0) target = $region13
    $region12: #{tpu_custom_call.1} parent=1 // pred_region
      %36 = dma.done [#allocation4], 256
    $region13: #{tpu_custom_call.1} parent=1 // pred_fallthru
      _
    // Predicated region
    $region14: #{tpu_custom_call.1} parent=1 // pred_check
      _
    $region15: #{tpu_custom_call.1} parent=1 // pred_check_branch
      %38 = sbr.rel (0) target = $region17
    $region16: #{tpu_custom_call.1} parent=1 // pred_region
      %39 = dma.done [#allocation7], 256
    $region17: #{tpu_custom_call.1} parent=1 // pred_fallthru
      _
    %p40 = scmp.eq.s32.totalorder 0, 0
    // Predicated region
    $region18: #{tpu_custom_call.1} parent=1 // pred_check
      %p41 = pneg %p40
    $region19: #{tpu_custom_call.1} parent=1 // pred_check_branch
      %43 = sbr.rel (%p41) target = $region21
    $region20: #{tpu_custom_call.1} parent=1 // pred_region
      %44 = vst [vmem:[#allocation2] sm:$0xff] 0.0
    $region21: #{tpu_custom_call.1} parent=1 // pred_fallthru
      _
    %v45 = vld [vmem:[#allocation3] sm:$0xff]
    %v46 = vld [vmem:[#allocation3 + $0x8] sm:$0xff]
    %v47 = vld [vmem:[#allocation6] sm:$0xff]
    %v48 = vld [vmem:[#allocation6 + $0x8] sm:$0xff]
    %v49 = vsub.f32 %v45, %v47
    %v50 = vsub.f32 %v46, %v48
    %v51 = vand.u32 2147483647, %v49
    %v52 = vand.u32 2147483647, %v50
    %v53 = vmul.f32 %v49, %v49
    %v54 = vmul.f32 %v50, %v50
    %v55 = vadd.f32 %v51, %v53
    %v56 = vadd.f32 %v52, %v54
    %v57 = vld [vmem:[#allocation2] sm:$0xff]
    %v58 = vadd.f32 %v55, %v56
    %v59 = vadd.f32 %v57, %v58
    %60 = vst [vmem:[#allocation2] sm:$0xff] %v59
    // Predicated region
    $region22: #{tpu_custom_call.1} parent=1 // pred_check
      %p61 = pneg %p40
    $region23: #{tpu_custom_call.1} parent=1 // pred_check_branch
      %63 = sbr.rel (%p61) target = $region25
    $region24: #{tpu_custom_call.1} parent=1 // pred_region
      %v64 = vld [vmem:[#allocation2] sm:$0xff]
      %65 = vadd.xlane.f32.xlu0 %v64
      %v66 = vpop.xlane.xlu0 %65
      %v67 = vrot.slane %v66, 4
      %v68 = vadd.f32 %v66, %v67
      %v69 = vrot.slane %v68, 2
      %v70 = vadd.f32 %v68, %v69
      %v71 = vrot.slane %v70, 1
      %v72 = vadd.f32 %v70, %v71
      %s73 = vtos %v72
      %s74 = smul.f32 %s73, 0.00048828125
      %s75 = scalar_lea.smem [#allocation8], 0
      %76 = sst [smem:[%s75]] %s74
    $region25: #{tpu_custom_call.1} parent=1 // pred_fallthru
      _
    // Predicated region
    $region26: #{tpu_custom_call.1} parent=1 // pred_check
      _
    $region27: #{tpu_custom_call.1} parent=1 // pred_check_branch
      %78 = sbr.rel (0) target = $region29
    $region28: #{tpu_custom_call.1} parent=1 // pred_region
      %s80 = ssub.s32 16, 16
      %81 = vsyncadd [#allocation5], %s80
      %84 = dma.smem_to_hbm [#allocation8], 16, %s2, [#allocation5]
    $region29: #{tpu_custom_call.1} parent=1 // pred_fallthru
      _
    // Predicated region
    $region30: #{tpu_custom_call.1} parent=1 // pred_check
      _
    $region31: #{tpu_custom_call.1} parent=1 // pred_check_branch
      %86 = sbr.rel (0) target = $region33
    $region32: #{tpu_custom_call.1} parent=1 // pred_region
      %87 = dma.done [#allocation5], 16
    $region33: #{tpu_custom_call.1} parent=1 // pred_fallthru
      _
    %88 = sfence
    %89 = vsyncpa [#allocation4], 1
    %90 = vsyncpa [#allocation7], 1
    %91 = vsyncpa [#allocation5], 1

</llo_original>
